<compile_context>
chip_gen: v5e
topology: v5e:2x2
jax: 0.10.0
libtpu: 0.0.40
codegen_flags: <defaults>
</compile_context>

<pallas_src>
import functools

import jax
import jax.numpy as jnp
from jax.experimental import pallas as pl
from jax.experimental.pallas import tpu as pltpu


def _round_up(x, m):
    return ((x + m - 1) // m) * m


def _default_hidden_dtype():
    """bf16 hidden path only where the VPU/EUP are bf16-native (v6e / v7x)."""
    try:
        kind = jax.devices()[0].device_kind.lower()
    except Exception:
        return jnp.float32
    if any(tag in kind for tag in ("v6", "v7", "6e", "7x")):
        return jnp.bfloat16
    return jnp.float32


def fcnet_kernel(*refs, num_linear, hidden_dtype):
    """One batch tile of the MLP, batch on lanes.

    refs = (x, w_0, b_0, ..., w_{L-2}, b_{L-2}, wT_{L-1}, b_{L-1}, out)
      x       : [in_dim  , TILE]     features on sublanes, batch on lanes
      w_l     : [out_l   , in_l]     hidden layers, PyTorch nn.Linear layout
      b_l     : [out_l   , 1]
      wT_last : [in_last , out_dim]  last layer weight, pre-transposed (host)
      b_last  : [out_dim , 1]
      out     : [out_dim , TILE]
    """
    x_ref, o_ref = refs[0], refs[-1]
    wb = refs[1:-1]

    a = x_ref[...].astype(hidden_dtype)

    # Hidden layers: MXU matmul (vector-extended slot, f32 accumulate) +
    # VPU bias add + EUP tanh.  No per-iteration broadcast splats on the VPU.
    for l in range(num_linear - 1):
        w = wb[2 * l][...].astype(hidden_dtype)           # [out_l, in_l]
        b = wb[2 * l + 1][...].astype(jnp.float32)        # [out_l, 1]
        z = jnp.dot(w, a, preferred_element_type=jnp.float32)   # MXU
        a = jnp.tanh((z + b).astype(hidden_dtype))               # VPU + EUP

    # Final Linear (no activation): scale on the VPU, cross-sublane reduce on
    # the XLU -- avoids accumulating through a 1/8-utilized [1, TILE] row.
    wT = wb[-2][...].astype(hidden_dtype)                 # [hidden, out_dim]
    b_last = wb[-1][...].astype(jnp.float32)              # [out_dim, 1]
    out_dim = wT.shape[1]
    rows = []
    for r in range(out_dim):                              # out_dim == 1 here
        t = a * wT[:, r:r + 1]                                        # VPU
        s = jnp.sum(t.astype(jnp.float32), axis=0, keepdims=True)     # XLU
        rows.append(s + b_last[r:r + 1, :])
    o = rows[0] if out_dim == 1 else jnp.concatenate(rows, axis=0)
    o_ref[...] = o.astype(o_ref.dtype)


# Cap keeps double-buffered x/out blocks + f32 kernel temporaries well under
# the 48 MiB VMEM limit below (v7x has only 64 MiB physical VMEM).
_MAX_TILE = 128 * 1024


def _choose_tiling(n, tile_n):
    """Pick (tile, steps, n_pad): pad only to a multiple of 128 lanes (never a
    whole tile), keep >= 2 grid steps when there is enough work so the
    "parallel" axis can use both TensorCores on v7x."""
    n128 = _round_up(max(n, 1), 128)
    cap = max(128, _round_up(min(tile_n, _MAX_TILE, n128), 128))
    steps = pl.cdiv(n128, cap)
    if steps == 1 and n128 >= 256:
        steps = 2
    tile = _round_up(pl.cdiv(n128, steps), 128)
    return tile, steps, tile * steps


def fcnet_forward_fm(x_fm, params, *, tile_n=64 * 1024, hidden_dtype=None):
    """Fast path: feature-major input [in_dim, N] -> feature-major output
    [out_dim, N].  No host-side transpose; supplying N as a multiple of 128
    also skips the padding copy.  params = [(w, b), ...] in nn.Linear layout
    (w: [out, in], b: [out, 1])."""
    if hidden_dtype is None:
        hidden_dtype = _default_hidden_dtype()

    in_dim, n = x_fm.shape
    num_linear = len(params)
    out_dim = params[-1][0].shape[0]

    tile, steps, n_pad = _choose_tiling(n, tile_n)
    if n_pad != n:
        x_fm = jnp.pad(x_fm, ((0, 0), (0, n_pad - n)))

    # Tiny weight/bias operands: whole-array blocks with a constant index_map
    # -> DMA'd once, VMEM-resident across all grid steps.  The last layer's
    # weight is pre-transposed on the host (a few bytes) so the in-kernel
    # scale+reduce needs no transpose.
    const = lambda i: (0, 0)
    wb_args, wb_specs = [], []
    for li, (w, b) in enumerate(params):
        w_op = w.T if li == num_linear - 1 else w
        for op in (w_op, b):
            wb_args.append(op)
            wb_specs.append(pl.BlockSpec(op.shape, const))

    kernel = functools.partial(
        fcnet_kernel, num_linear=num_linear, hidden_dtype=hidden_dtype)

    out_fm = pl.pallas_call(
        kernel,
        out_shape=jax.ShapeDtypeStruct((out_dim, n_pad), x_fm.dtype),
        grid=(steps,),
        in_specs=[pl.BlockSpec((in_dim, tile), lambda i: (0, i))] + wb_specs,
        out_specs=pl.BlockSpec((out_dim, tile), lambda i: (0, i)),
        compiler_params=pltpu.CompilerParams(
            dimension_semantics=("parallel",),        # v7x: shard over 2 TCs
            vmem_limit_bytes=48 * 1024 * 1024,        # v5e default is 16 MiB
        ),
    )(x_fm, *wb_args)

    return out_fm[:, :n] if n_pad != n else out_fm


def fcnet_forward(x, params, *, tile_n=64 * 1024, hidden_dtype=None):
    """Drop-in PyTorch-layout forward: x [N, in_dim] -> [N, out_dim].

    The [N, in_dim] -> [in_dim, N] transpose costs one extra HBM pass; for
    large PINN collocation batches generate the points feature-major and call
    `fcnet_forward_fm` directly."""
    out_fm = fcnet_forward_fm(x.T, params, tile_n=tile_n,
                              hidden_dtype=hidden_dtype)
    return out_fm.T


def init_params(key, layers=(2, 10, 1), dtype=jnp.float32):
    """PyTorch nn.Linear init: U(-1/sqrt(fan_in), 1/sqrt(fan_in)), w: [out, in]."""
    params = []
    for in_c, out_c in zip(layers[:-1], layers[1:]):
        key, kw, kb = jax.random.split(key, 3)
        bound = 1.0 / float(in_c) ** 0.5
        w = jax.random.uniform(kw, (out_c, in_c), dtype, -bound, bound)
        b = jax.random.uniform(kb, (out_c, 1), dtype, -bound, bound)
        params.append((w, b))
    return params


def fcnet_reference(x, params):
    """Pure-JAX reference of the PyTorch forward: (Linear -> Tanh)* -> Linear."""
    h = x
    for w, b in params[:-1]:
        h = jnp.tanh(h @ w.T + b[:, 0])
    w, b = params[-1]
    return h @ w.T + b[:, 0]


if __name__ == "__main__":
    key = jax.random.PRNGKey(0)
    kp, k1, k2, k3 = jax.random.split(key, 4)

    layers = (2, 10, 1)                       # FCNet.__init__ default
    params = init_params(kp, layers)

    # 1) Small batch, single tile (pads 8 -> 128 lanes), strict f32 check.
    x1 = jax.random.normal(k1, (8, layers[0]), jnp.float32)
    o1 = jax.block_until_ready(
        fcnet_forward(x1, params, hidden_dtype=jnp.float32))
    r1 = fcnet_reference(x1, params)
    assert o1.shape == (8, layers[-1]), o1.shape
    assert jnp.allclose(o1, r1, atol=1e-5, rtol=1e-5)

    # 2) Ragged batch, multi-step grid (tile_n=128 -> 3 tiles, pad 300->384),
    #    strict f32 check; exercises streaming x/o with resident weights.
    x2 = jax.random.normal(k2, (300, layers[0]), jnp.float32)
    o2 = jax.block_until_ready(
        fcnet_forward(x2, params, tile_n=128, hidden_dtype=jnp.float32))
    r2 = fcnet_reference(x2, params)
    assert o2.shape == (300, layers[-1]), o2.shape
    assert jnp.allclose(o2, r2, atol=1e-5, rtol=1e-5)

    # 3) Feature-major fast path (no host transpose, no padding copy), default
    #    tile selection (forces >= 2 grid steps for megacore), strict f32.
    x3 = jax.random.normal(k3, (2048, layers[0]), jnp.float32)
    o3_fm = jax.block_until_ready(
        fcnet_forward_fm(x3.T, params, hidden_dtype=jnp.float32))
    r3 = fcnet_reference(x3, params)
    assert o3_fm.shape == (layers[-1], 2048), o3_fm.shape
    assert jnp.allclose(o3_fm.T, r3, atol=1e-5, rtol=1e-5)

    # 4) Auto dtype (bf16 hidden path on v6e/v7x, f32 elsewhere) -- loose
    #    smoke check; strict correctness is covered by the f32 runs above.
    o4 = jax.block_until_ready(fcnet_forward(x2, params))
    assert o4.shape == (300, layers[-1]), o4.shape
    assert jnp.allclose(o4, r2, atol=0.15, rtol=0.0)

    print("KERNEL_OK")
</pallas_src>

<mosaic_0001>
module attributes {stable_mosaic.version = 11 : i64} {
  func.func @fcnet_kernel(%arg0: i32, %arg1: memref<2x128xf32, #tpu.memory_space<vmem>>, %arg2: memref<10x2xf32, #tpu.memory_space<vmem>>, %arg3: memref<10x1xf32, #tpu.memory_space<vmem>>, %arg4: memref<10x1xf32, #tpu.memory_space<vmem>>, %arg5: memref<1x1xf32, #tpu.memory_space<vmem>>, %arg6: memref<1x128xf32, #tpu.memory_space<vmem>>) attributes {dimension_semantics = [#tpu.dimension_semantics<parallel>], iteration_bounds = array<i64: 1>, scalar_prefetch = 0 : i64, scratch_operands = 0 : i64, tpu.core_type = #tpu.core_type<tc>, window_params = [{transform_indices = @transform_0, window_bounds = array<i64: 2, 128>}, {pipeline_mode = #tpu.pipeline_mode<synchronous>, transform_indices = @transform_1, window_bounds = array<i64: 10, 2>}, {pipeline_mode = #tpu.pipeline_mode<synchronous>, transform_indices = @transform_2, window_bounds = array<i64: 10, 1>}, {pipeline_mode = #tpu.pipeline_mode<synchronous>, transform_indices = @transform_3, window_bounds = array<i64: 10, 1>}, {pipeline_mode = #tpu.pipeline_mode<synchronous>, transform_indices = @transform_4, window_bounds = array<i64: 1, 1>}, {transform_indices = @transform_5, window_bounds = array<i64: 1, 128>}]} {
    %c0 = arith.constant 0 : index
    %c0_0 = arith.constant 0 : index
    %0 = vector.load %arg1[%c0, %c0_0] : memref<2x128xf32, #tpu.memory_space<vmem>>, vector<2x128xf32>
    %c0_1 = arith.constant 0 : index
    %c0_2 = arith.constant 0 : index
    %1 = vector.load %arg2[%c0_1, %c0_2] : memref<10x2xf32, #tpu.memory_space<vmem>>, vector<10x2xf32>
    %c0_3 = arith.constant 0 : index
    %c0_4 = arith.constant 0 : index
    %2 = vector.load %arg3[%c0_3, %c0_4] : memref<10x1xf32, #tpu.memory_space<vmem>>, vector<10x1xf32>
    %cst = arith.constant dense<0.000000e+00> : vector<10x128xf32>
    %3 = tpu.matmul %1, %0, %cst {dimension_numbers = #tpu.dot_dimension_numbers<[1], [0], [0], [1], [0, 0, 1, 1], [], []>} : vector<10x2xf32>, vector<2x128xf32>, vector<10x128xf32> -> vector<10x128xf32>
    %4 = vector.broadcast %2 : vector<10x1xf32> to vector<10x128xf32>
    %5 = arith.addf %3, %4 : vector<10x128xf32>
    %6 = math.tanh %5 : vector<10x128xf32>
    %c0_5 = arith.constant 0 : index
    %c0_6 = arith.constant 0 : index
    %7 = vector.load %arg4[%c0_5, %c0_6] : memref<10x1xf32, #tpu.memory_space<vmem>>, vector<10x1xf32>
    %c0_7 = arith.constant 0 : index
    %c0_8 = arith.constant 0 : index
    %8 = vector.load %arg5[%c0_7, %c0_8] : memref<1x1xf32, #tpu.memory_space<vmem>>, vector<1x1xf32>
    %9 = vector.broadcast %7 : vector<10x1xf32> to vector<10x128xf32>
    %10 = arith.mulf %6, %9 : vector<10x128xf32>
    %cst_9 = arith.constant dense<0.000000e+00> : vector<128xf32>
    %11 = vector.multi_reduction <add>, %10, %cst_9 [0] : vector<10x128xf32> to vector<128xf32>
    %12 = vector.shape_cast %11 : vector<128xf32> to vector<1x128xf32>
    %13 = vector.broadcast %8 : vector<1x1xf32> to vector<1x128xf32>
    %14 = arith.addf %12, %13 : vector<1x128xf32>
    %c0_10 = arith.constant 0 : index
    %c0_11 = arith.constant 0 : index
    %15 = vector.load %arg6[%c0_10, %c0_11] : memref<1x128xf32, #tpu.memory_space<vmem>>, vector<1x128xf32>
    tpu.vector_store %arg6[%c0_10, %c0_11], %14 {strides = array<i32>} : memref<1x128xf32, #tpu.memory_space<vmem>>, vector<1x128xf32>,
    return
  }
  func.func @transform_0(%arg0: i32) -> (i32, i32) {
    %c0_i32 = arith.constant 0 : i32
    %c0_i32_0 = arith.constant 0 : i32
    return %c0_i32, %arg0 : i32, i32
  }
  func.func @transform_1(%arg0: i32) -> (i32, i32) {
    %c0_i32 = arith.constant 0 : i32
    %c0_i32_0 = arith.constant 0 : i32
    %c0_i32_1 = arith.constant 0 : i32
    return %c0_i32, %c0_i32_0 : i32, i32
  }
  func.func @transform_2(%arg0: i32) -> (i32, i32) {
    %c0_i32 = arith.constant 0 : i32
    %c0_i32_0 = arith.constant 0 : i32
    %c0_i32_1 = arith.constant 0 : i32
    return %c0_i32, %c0_i32_0 : i32, i32
  }
  func.func @transform_3(%arg0: i32) -> (i32, i32) {
    %c0_i32 = arith.constant 0 : i32
    %c0_i32_0 = arith.constant 0 : i32
    %c0_i32_1 = arith.constant 0 : i32
    return %c0_i32, %c0_i32_0 : i32, i32
  }
  func.func @transform_4(%arg0: i32) -> (i32, i32) {
    %c0_i32 = arith.constant 0 : i32
    %c0_i32_0 = arith.constant 0 : i32
    %c0_i32_1 = arith.constant 0 : i32
    return %c0_i32, %c0_i32_0 : i32, i32
  }
  func.func @transform_5(%arg0: i32) -> (i32, i32) {
    %c0_i32 = arith.constant 0 : i32
    %c0_i32_0 = arith.constant 0 : i32
    return %c0_i32, %arg0 : i32, i32
  }
}

</mosaic_0001>

<llo_original>
// kernel: tpu_custom_call.1
$region0: #{tpu_custom_call.1}
  #allocation0 [shape = 'u32[]', space=smem, size = 0x4, offset = 0x4, fixed_abs, tag = 'smem constant byte address 0x4 - core index']
  #allocation1 [shape = 'u32[72,128]{1,0:T(1,128)}', space=vmem, size = 0x9000, scoped, tag = 'internal scratch']
  #allocation2 [shape = 'f32[1,1]{1,0:T(1,128)S(1)}', space=vmem, size = 0x200, scoped, tag = 'scoped memory for tpu_custom_call.1']
  %s0 = inlined_call_operand.vmem [shape: f32[2,128], index: 0, kind: input, shape index: {}]
  %s1 = inlined_call_operand.vmem [shape: f32[10,2], index: 1, kind: input, shape index: {}]
  %s2 = inlined_call_operand.vmem [shape: f32[10,1], index: 2, kind: input, shape index: {}]
  %s3 = inlined_call_operand.vmem [shape: f32[10,1], index: 3, kind: input, shape index: {}]
  %s4 = inlined_call_operand.<no memory space> [shape: f32[1,1], index: 4, kind: input, shape index: {}]
  %s5 = inlined_call_operand.hbm [shape: f32[1,128], index: 5, kind: output, shape index: {}]
  %s6 = sld [smem:[#allocation0]]
  $region30: #{tpu_custom_call.1} parent=0
    _
  %s8 = ssub.s32 1, %s6
  %s9 = scalar_select 0, %s8, %s6
  %v10 = vstv %s4
  %11 = vst [vmem:[#allocation2] sm:$0x1] %v10
  $region1: #{tpu_custom_call.1} parent=0
    #allocation3 [shape = 'u8[512]{0}', space=vmem, size = 0x400, scoped, tag = 'output window, operand 0, single buffered']
    #allocation4 [shape = 's32[1]{0}', space=sflag, size = 0x4, scoped, tag = 'scoped memory for tpu_custom_call.1']
    %12 = vsyncpa [#allocation4], 0
    // Predicated region
    $region2: #{tpu_custom_call.1} parent=1 // pred_check
      _
    $region3: #{tpu_custom_call.1} parent=1 // pred_check_branch
      %14 = sbr.rel (0) target = $region5
    $region4: #{tpu_custom_call.1} parent=1 // pred_region
      _
    $region5: #{tpu_custom_call.1} parent=1 // pred_fallthru
      _
    // Predicated region
    $region6: #{tpu_custom_call.1} parent=1 // pred_check
      _
    $region7: #{tpu_custom_call.1} parent=1 // pred_check_branch
      %16 = sbr.rel (0) target = $region9
    $region8: #{tpu_custom_call.1} parent=1 // pred_region
      _
    $region9: #{tpu_custom_call.1} parent=1 // pred_fallthru
      _
    // Predicated region
    $region10: #{tpu_custom_call.1} parent=1 // pred_check
      _
    $region11: #{tpu_custom_call.1} parent=1 // pred_check_branch
      %18 = sbr.rel (0) target = $region13
    $region12: #{tpu_custom_call.1} parent=1 // pred_region
      _
    $region13: #{tpu_custom_call.1} parent=1 // pred_fallthru
      _
    // Predicated region
    $region14: #{tpu_custom_call.1} parent=1 // pred_check
      _
    $region15: #{tpu_custom_call.1} parent=1 // pred_check_branch
      %20 = sbr.rel (0) target = $region17
    $region16: #{tpu_custom_call.1} parent=1 // pred_region
      _
    $region17: #{tpu_custom_call.1} parent=1 // pred_fallthru
      _
    // Predicated region
    $region18: #{tpu_custom_call.1} parent=1 // pred_check
      _
    $region19: #{tpu_custom_call.1} parent=1 // pred_check_branch
      %22 = sbr.rel (0) target = $region21
    $region20: #{tpu_custom_call.1} parent=1 // pred_region
      _
    $region21: #{tpu_custom_call.1} parent=1 // pred_fallthru
      _
    %v23 = vld [vmem:[%s0] sm:$0x3]
    %v24 = vld [vmem:[%s1] sm:$0xff]
    %v25 = vld [vmem:[%s1 + $0x8] sm:$0x3]
    %v26 = vld [vmem:[%s2] sm:$0xff]
    %v27 = vld [vmem:[%s2 + $0x8] sm:$0x3]
    %29 = vset.pattern.permute.xlu0 0
    %30 = vperm.xlu0 %29, %v26
    %v31 = vpop.permute.xlu0 %30
    %34 = vset.pattern.permute.xlu0 0
    %35 = vperm.xlu0 %34, %v27
    %v36 = vpop.permute.xlu0 %35
    %vm38 = vcmask 15360
    %v40 = vsel %vm38, %v24, 0
    %v43 = vsel %vm38, %v25, 0
    %vm45 = vcmask 1041408
    %v47 = vsel %vm45, %v23, 0
    %49 = vmatpush.msra.mxu0 0.0
    %50 = vmatpush.msra.mxu0 0.0
    %51 = vmatpush.msra.mxu0 0.0
    %52 = vmatpush.msra.mxu0 0.0
    %53 = vmatpush.msra.mxu0 0.0
    %54 = vmatpush.msra.mxu0 0.0
    %55 = vmatpush.msra.mxu0 0.0
    %56 = vmatpush.msra.mxu0 0.0
    %57 = vmatpush.msra.mxu0 0.0
    %58 = vmatpush.msra.mxu0 0.0
    %59 = vmatpush.msra.mxu0 0.0
    %60 = vmatpush.msra.mxu0 0.0
    %61 = vmatpush.msra.mxu0 0.0
    %62 = vmatpush.msra.mxu0 0.0
    %63 = vmatpush.msra.mxu0 0.0
    %64 = vmatpush.msra.mxu0 %v47
    %65 = vmatmul.f32.gmra.mxu0 %v40
    %v66 = vpop.f32.mrf.mxu0
    %v67 = vadd.f32 %v31, %v66
    %68 = vmatmul.f32.gmra.mxu0 %v43
    %v69 = vpop.f32.mrf.mxu0
    %v70 = vadd.f32 %v36, %v69
    %71 = vdwg.mxu0
    %v72 = vtanh.pop %v67
    %v73 = vtanh.pop %v70
    %v74 = vld [vmem:[%s3] sm:$0xff]
    %v75 = vld [vmem:[%s3 + $0x8] sm:$0x3]
    %v76 = vld [vmem:[#allocation2] sm:$0x1]
    %78 = vset.pattern.permute.xlu0 0
    %79 = vperm.xlu0 %78, %v74
    %v80 = vpop.permute.xlu0 %79
    %83 = vset.pattern.permute.xlu0 0
    %84 = vperm.xlu0 %83, %v75
    %v85 = vpop.permute.xlu0 %84
    %v87 = vmul.f32 %v72, %v80
    %v88 = vmul.f32 %v73, %v85
    %v89 = vsel %vm45, %v88, 0.0
    %v90 = vadd.f32 %v87, %v89
    %v91 = vrot.slane %v90, 4
    %v92 = vadd.f32 %v90, %v91
    %v93 = vrot.slane %v92, 2
    %v94 = vadd.f32 %v92, %v93
    %v95 = vrot.slane %v94, 1
    %v96 = vadd.f32 %v94, %v95
    %98 = vset.pattern.permute.xlu0 0
    %99 = vperm.xlu0 %98, %v76
    %v100 = vpop.permute.xlu0 %99
    %v102 = vperm.slane %v100, 0
    %v103 = vadd.f32 %v96, %v102
    %104 = vst [vmem:[#allocation3] sm:$0x1] %v103
    // Predicated region
    $region22: #{tpu_custom_call.1} parent=1 // pred_check
      _
    $region23: #{tpu_custom_call.1} parent=1 // pred_check_branch
      %106 = sbr.rel (0) target = $region25
    $region24: #{tpu_custom_call.1} parent=1 // pred_region
      %108 = vsyncadd [#allocation4], 0
      %s110 = sshll.u32 [#allocation3], 4
      %s111 = int_to_ptr.vmem [resolvable:$true] %s110
      %s112 = sshll.u32 %s5, 4
      %s113 = int_to_ptr.hbm [resolvable:$true] %s112
      %115 = dma.vmem_to_hbm [thread:$0]  %s111, 16, %s113, [#allocation4]
    $region25: #{tpu_custom_call.1} parent=1 // pred_fallthru
      _
    // Predicated region
    $region26: #{tpu_custom_call.1} parent=1 // pred_check
      _
    $region27: #{tpu_custom_call.1} parent=1 // pred_check_branch
      %117 = sbr.rel (0) target = $region29
    $region28: #{tpu_custom_call.1} parent=1 // pred_region
      %119 = dma.done [#allocation4], 16
    $region29: #{tpu_custom_call.1} parent=1 // pred_fallthru
      _
    %120 = vsyncpa [#allocation4], 1

</llo_original>
